<compile_context>
chip_gen: v7x
topology: tpu7x:2x2x1
jax: 0.10.0
libtpu: 0.0.40
codegen_flags: <defaults>
</compile_context>

<pallas_src>
import jax
import jax.numpy as jnp
from jax import lax
from jax.experimental import pallas as pl
from jax.experimental.pallas import tpu as pltpu


# ---------------------------------------------------------------------------
# small helpers
# ---------------------------------------------------------------------------
def _round_up(n, m):
    return ((n + m - 1) // m) * m


def _largest_divisor_le(n, cap):
    cap = max(1, min(n, cap))
    for d in range(cap, 0, -1):
        if n % d == 0:
            return d
    return 1


def _divisor_tile(n, target, mult):
    """Largest multiple of `mult` dividing n and <= max(target, mult)."""
    best = mult
    d = mult
    lim = min(n, max(target, mult))
    while d <= lim:
        if n % d == 0:
            best = d
        d += mult
    return best


def _vmem_limit(nbytes):
    """2x headroom over the accounted footprint, clamped to [16 MiB, 128 MiB]."""
    return int(min(max(2 * nbytes, 16 * 2 ** 20), 128 * 2 ** 20))


def _pad_gate_cols(w, H, Hp):
    """(rows<=Hp, 4H) -> (Hp, 4Hp): each gate gets its own 128-aligned lane slab."""
    rows = w.shape[0]
    out = jnp.zeros((Hp, 4 * Hp), jnp.float32)
    for k in range(4):
        out = out.at[:rows, k * Hp:k * Hp + H].set(w[:, k * H:(k + 1) * H])
    return out


def _pad_gate_bias(b, H, Hp):
    out = jnp.zeros((1, 4 * Hp), jnp.float32)
    for k in range(4):
        out = out.at[0, k * Hp:k * Hp + H].set(b[k * H:(k + 1) * H])
    return out


# ---------------------------------------------------------------------------
# Kernel 1: generic lane-dense tiled matmul + broadcast bias
# (used for the hoisted input projection Gx = emb @ W_x + b and the fc layer)
# ---------------------------------------------------------------------------
def _matmul_bias_kernel(x_ref, w_ref, b_ref, o_ref):
    o_ref[...] = (jnp.dot(x_ref[...], w_ref[...],
                          preferred_element_type=jnp.float32)
                  + b_ref[...]).astype(o_ref.dtype)


def _tiled_matmul_bias(x, w, b, *, tm_target=512, tn_target=1024):
    """(M, K) @ (K, N) + b(1, N); N (weight) axis is the OUTER grid axis so the
    weight block is streamed from HBM exactly once. M % 8 == 0, K/N % 128 == 0."""
    M, K = x.shape
    N = w.shape[1]
    tm = _divisor_tile(M, tm_target, 8)
    tn = _divisor_tile(N, tn_target, 128)
    vmem = 4 * 2 * (tm * K + K * tn + tn + tm * tn)     # double-buffered in/out
    return pl.pallas_call(
        _matmul_bias_kernel,
        out_shape=jax.ShapeDtypeStruct((M, N), jnp.float32),
        grid_spec=pltpu.PrefetchScalarGridSpec(
            num_scalar_prefetch=0,
            grid=(N // tn, M // tm),                    # weight-tile outer
            in_specs=[
                pl.BlockSpec((tm, K), lambda j, i: (i, 0)),
                pl.BlockSpec((K, tn), lambda j, i: (0, j)),   # constant over i
                pl.BlockSpec((1, tn), lambda j, i: (0, j)),
            ],
            out_specs=pl.BlockSpec((tm, tn), lambda j, i: (i, j)),
        ),
        compiler_params=pltpu.CompilerParams(
            dimension_semantics=("parallel", "parallel"),
            vmem_limit_bytes=_vmem_limit(vmem)),
    )(x, w, b)


# ---------------------------------------------------------------------------
# Kernel 2: LSTM recurrence over (batch tile, time chunk) grid
# ---------------------------------------------------------------------------
def decoder_lstm_recurrence_kernel(gx_ref, gc_ref, h0_ref, c0_ref, whh_ref,
                                   hseq_ref, h_out_ref, c_out_ref,
                                   h_sc, c_sc):
    Hp = h0_ref.shape[-1]
    T_CHUNK = gx_ref.shape[0]
    t_idx = pl.program_id(1)

    # carry lives in VMEM scratch across time chunks; re-init per batch tile
    @pl.when(t_idx == 0)
    def _():
        h_sc[...] = h0_ref[...]
        c_sc[...] = c0_ref[...]

    whh = whh_ref[...]            # (Hp, 4Hp), gate-slab layout
    gc = gc_ref[...]              # (B_TILE, 4Hp) loop-invariant context term

    def step(tt, carry):
        h, c = carry
        gates = gx_ref[tt] + gc + jnp.dot(h, whh,
                                          preferred_element_type=jnp.float32)
        # each gate occupies its own 128-aligned lane slab (no XLU shuffles)
        i_g = jax.nn.sigmoid(gates[:, 0 * Hp:1 * Hp])
        f_g = jax.nn.sigmoid(gates[:, 1 * Hp:2 * Hp])
        g_g = jnp.tanh(gates[:, 2 * Hp:3 * Hp])
        o_g = jax.nn.sigmoid(gates[:, 3 * Hp:4 * Hp])
        c_new = f_g * c + i_g * g_g
        h_new = o_g * jnp.tanh(c_new)
        hseq_ref[tt] = h_new                       # dense (B_TILE, Hp) slab store
        return (h_new, c_new)

    # T_CHUNK is small (<=8) by construction, so a full unroll is a bounded
    # partial unroll of the overall sequence.
    h_fin, c_fin = lax.fori_loop(0, T_CHUNK, step, (h_sc[...], c_sc[...]),
                                 unroll=True)
    h_sc[...] = h_fin
    c_sc[...] = c_fin

    @pl.when(t_idx == pl.num_programs(1) - 1)
    def _():
        h_out_ref[...] = h_sc[...]
        c_out_ref[...] = c_sc[...]


# ---------------------------------------------------------------------------
# One-time parameter preparation (hoisted out of the per-call path)
# ---------------------------------------------------------------------------
def prepare_decoder_params(params):
    V, H = params["embedding"].shape
    Hp = _round_up(H, 128)
    Vp = _round_up(V, 128)

    emb_p = jnp.zeros((V, Hp), jnp.float32).at[:, :H].set(
        params["embedding"].astype(jnp.float32))
    w_ih_t = params["w_ih"].T.astype(jnp.float32)         # (2H, 4H)
    wx = _pad_gate_cols(w_ih_t[:H], H, Hp)                # x-part      (Hp, 4Hp)
    wc = _pad_gate_cols(w_ih_t[H:], H, Hp)                # context-part(Hp, 4Hp)
    whh = _pad_gate_cols(params["w_hh"].T.astype(jnp.float32), H, Hp)
    b = _pad_gate_bias(params["b_ih"] + params["b_hh"], H, Hp)
    w_fc = jnp.zeros((Hp, Vp), jnp.float32).at[:H, :V].set(
        params["w_fc"].T.astype(jnp.float32))
    b_fc = jnp.zeros((1, Vp), jnp.float32).at[0, :V].set(
        params["b_fc"].astype(jnp.float32))
    return {"emb": emb_p, "wx": wx, "wc": wc, "whh": whh, "b": b,
            "w_fc": w_fc, "b_fc": b_fc, "H": H, "Hp": Hp, "V": V, "Vp": Vp}


# ---------------------------------------------------------------------------
# Forward wrapper
# ---------------------------------------------------------------------------
def decoder_lstm_forward(x_ids, encoder_output, hidden, cell, prepared):
    H, Hp, V, Vp = prepared["H"], prepared["Hp"], prepared["V"], prepared["Vp"]
    B, T = x_ids.shape

    # --- batch tiling (>=8 sublanes). If a 2-TensorCore part is detected, split
    # a single tile in two so the "parallel" batch axis feeds both cores. ---
    Bp = _round_up(B, 8)
    try:
        num_tc = int(getattr(jax.devices()[0], "num_cores", 1) or 1)
    except Exception:
        num_tc = 1
    if Bp > 128:
        # TODO(synk): raise to 256 on v6e/v7x (256-wide MXU) when VMEM allows.
        B_TILE = 128
    elif num_tc > 1 and Bp >= 16:
        B_TILE = _round_up(Bp // num_tc, 8)
    else:
        B_TILE = Bp
    Bp = _round_up(Bp, B_TILE)
    nb = Bp // B_TILE

    # --- embedding gather directly into time-major (T, B, Hp); pad batch ---
    # TODO(synk): nn.Dropout in the embedding Sequential is identity in eval mode.
    emb_tbh = jnp.take(prepared["emb"], x_ids.T, axis=0)          # (T, B, Hp)
    emb_p = jnp.pad(emb_tbh, ((0, 0), (0, Bp - B), (0, 0)))       # (T, Bp, Hp)

    # --- attention in XLA: softmax over a size-1 axis == 1, so the context is
    # sum_S(encoder_output); gc = context @ W_c is loop-invariant. ---
    context = jnp.sum(encoder_output.astype(jnp.float32), axis=1)  # (B, H)
    ctx_p = jnp.pad(context, ((0, Bp - B), (0, Hp - H)))           # (Bp, Hp)
    gc = ctx_p @ prepared["wc"]                                    # (Bp, 4Hp)

    h0_p = jnp.pad(hidden[0].astype(jnp.float32), ((0, Bp - B), (0, Hp - H)))
    c0_p = jnp.pad(cell[0].astype(jnp.float32), ((0, Bp - B), (0, Hp - H)))

    # --- hoisted input projection: Gx = emb @ W_x + b (tiled Pallas matmul) ---
    gx_flat = _tiled_matmul_bias(emb_p.reshape(T * Bp, Hp),
                                 prepared["wx"], prepared["b"])
    gx = gx_flat.reshape(T, Bp, 4 * Hp)

    # --- time chunking so the streamed Gx block stays <= ~8 MiB per buffer ---
    gx_row_bytes = B_TILE * 4 * Hp * 4
    t_cap = max(1, min(8, (8 * 2 ** 20) // gx_row_bytes))
    T_CHUNK = _largest_divisor_le(T, t_cap)
    nt = T // T_CHUNK

    vmem_rec = 4 * (2 * T_CHUNK * B_TILE * 4 * Hp      # gx in (double-buffered)
                    + 2 * B_TILE * 4 * Hp              # gc
                    + 4 * B_TILE * Hp                  # h0, c0
                    + 2 * Hp * 4 * Hp                  # W_hh (never re-fetched)
                    + 2 * T_CHUNK * B_TILE * Hp        # hseq out
                    + 4 * B_TILE * Hp                  # final h, c
                    + 2 * B_TILE * Hp)                 # carry scratch

    hseq, h_out, c_out = pl.pallas_call(
        decoder_lstm_recurrence_kernel,
        out_shape=(
            jax.ShapeDtypeStruct((T, Bp, Hp), jnp.float32),   # hseq (time-major)
            jax.ShapeDtypeStruct((Bp, Hp), jnp.float32),      # final hidden
            jax.ShapeDtypeStruct((Bp, Hp), jnp.float32),      # final cell
        ),
        grid_spec=pltpu.PrefetchScalarGridSpec(
            num_scalar_prefetch=0,
            grid=(nb, nt),
            in_specs=[
                pl.BlockSpec((T_CHUNK, B_TILE, 4 * Hp), lambda b, t: (t, b, 0)),
                pl.BlockSpec((B_TILE, 4 * Hp), lambda b, t: (b, 0)),
                pl.BlockSpec((B_TILE, Hp), lambda b, t: (b, 0)),
                pl.BlockSpec((B_TILE, Hp), lambda b, t: (b, 0)),
                # constant index_map -> DMA'd once per kernel; (pl.Buffered(1)
                # would also halve its VMEM footprint, left off for portability)
                pl.BlockSpec((Hp, 4 * Hp), lambda b, t: (0, 0)),
            ],
            out_specs=[
                pl.BlockSpec((T_CHUNK, B_TILE, Hp), lambda b, t: (t, b, 0)),
                pl.BlockSpec((B_TILE, Hp), lambda b, t: (b, 0)),
                pl.BlockSpec((B_TILE, Hp), lambda b, t: (b, 0)),
            ],
            scratch_shapes=[pltpu.VMEM((B_TILE, Hp), jnp.float32),
                            pltpu.VMEM((B_TILE, Hp), jnp.float32)],
        ),
        compiler_params=pltpu.CompilerParams(
            dimension_semantics=("parallel", "arbitrary"),
            vmem_limit_bytes=_vmem_limit(vmem_rec)),
    )(gx, gc, h0_p, c0_p, prepared["whh"])

    # --- fc projection: transpose the small hseq (not the huge logits) and run
    # the vocab-outer tiled matmul so the (Hp, Vp) weight streams exactly once ---
    hseq_bt = jnp.transpose(hseq, (1, 0, 2)).reshape(Bp * T, Hp)
    logits_flat = _tiled_matmul_bias(hseq_bt, prepared["w_fc"], prepared["b_fc"])
    logits = logits_flat.reshape(Bp, T, Vp)[:B, :, :V]            # (B, T, V)

    h_fin = h_out[:B, :H][None]                                   # (1, B, H)
    c_fin = c_out[:B, :H][None]                                   # (1, B, H)
    return logits, h_fin, c_fin


# ---------------------------------------------------------------------------
# Params + pure-JAX reference
# ---------------------------------------------------------------------------
def init_params(key, vocab, hidden):
    ks = jax.random.split(key, 7)
    bound = 1.0 / jnp.sqrt(jnp.float32(hidden))
    emb = jax.random.normal(ks[0], (vocab, hidden), jnp.float32)
    emb = emb.at[0].set(0.0)                                    # padding_idx=0
    u = lambda k, shp: jax.random.uniform(k, shp, jnp.float32, -bound, bound)
    return {
        "embedding": emb,
        "w_ih": u(ks[1], (4 * hidden, 2 * hidden)),
        "w_hh": u(ks[2], (4 * hidden, hidden)),
        "b_ih": u(ks[3], (4 * hidden,)),
        "b_hh": u(ks[4], (4 * hidden,)),
        "w_fc": u(ks[5], (vocab, hidden)),
        "b_fc": u(ks[6], (vocab,)),
    }


def reference_forward(x_ids, enc, hidden, cell, params):
    """Pure-JAX reference mirroring the PyTorch module."""
    emb = jnp.take(params["embedding"], x_ids, axis=0)          # (B, T, H)
    h0 = jnp.transpose(hidden, (1, 0, 2))                       # (B, 1, H)
    score = jnp.einsum("bsh,bqh->bsq", enc, h0)                 # (B, S, 1)
    w = jax.nn.softmax(score, axis=2)                           # ones
    context = jnp.einsum("bsq,bsh->bqh", w, enc)                # (B, 1, H)
    B, T, H = emb.shape
    ctx_rep = jnp.broadcast_to(context, (B, T, H))
    x = jnp.concatenate([emb, ctx_rep], axis=2)                 # (B, T, 2H)

    w_ih, w_hh = params["w_ih"], params["w_hh"]
    b = params["b_ih"] + params["b_hh"]

    def step(carry, x_t):
        h, c = carry
        gates = x_t @ w_ih.T + h @ w_hh.T + b
        i = jax.nn.sigmoid(gates[:, 0 * H:1 * H])
        f = jax.nn.sigmoid(gates[:, 1 * H:2 * H])
        g = jnp.tanh(gates[:, 2 * H:3 * H])
        o = jax.nn.sigmoid(gates[:, 3 * H:4 * H])
        c_new = f * c + i * g
        h_new = o * jnp.tanh(c_new)
        return (h_new, c_new), h_new

    (h_fin, c_fin), hs = lax.scan(step, (hidden[0], cell[0]),
                                  jnp.transpose(x, (1, 0, 2)))
    out_seq = jnp.transpose(hs, (1, 0, 2))                      # (B, T, H)
    logits = out_seq @ params["w_fc"].T + params["b_fc"]
    return logits, h_fin[None], c_fin[None]


if __name__ == "__main__":
    B, T, S, H, V = 2, 8, 10, 32, 64
    key = jax.random.PRNGKey(0)
    k_ids, k_enc, k_h, k_c, k_params = jax.random.split(key, 5)

    x_ids = jax.random.randint(k_ids, (B, T), 0, V, dtype=jnp.int32)
    encoder_output = jax.random.normal(k_enc, (B, S, H), jnp.float32)
    hidden = jax.random.normal(k_h, (1, B, H), jnp.float32)
    cell = jax.random.normal(k_c, (1, B, H), jnp.float32)
    params = init_params(k_params, V, H)

    prepared = prepare_decoder_params(params)       # padded weights, built once

    logits, h_out, c_out = jax.block_until_ready(
        decoder_lstm_forward(x_ids, encoder_output, hidden, cell, prepared))

    ref_logits, ref_h, ref_c = reference_forward(
        x_ids, encoder_output, hidden, cell, params)

    assert logits.shape == (B, T, V) and h_out.shape == (1, B, H) and c_out.shape == (1, B, H)
    assert jnp.allclose(logits, ref_logits, rtol=1e-4, atol=1e-4)
    assert jnp.allclose(h_out, ref_h, rtol=1e-4, atol=1e-4)
    assert jnp.allclose(c_out, ref_c, rtol=1e-4, atol=1e-4)

    print("KERNEL_OK")
</pallas_src>

<mosaic_0001>
module attributes {stable_mosaic.version = 11 : i64} {
  func.func @_matmul_bias_kernel(%arg0: i32, %arg1: i32, %arg2: memref<64x128xf32, #tpu.memory_space<vmem>>, %arg3: memref<128x512xf32, #tpu.memory_space<vmem>>, %arg4: memref<1x512xf32, #tpu.memory_space<vmem>>, %arg5: memref<64x512xf32, #tpu.memory_space<vmem>>) attributes {dimension_semantics = [#tpu.dimension_semantics<parallel>, #tpu.dimension_semantics<parallel>], iteration_bounds = array<i64: 1, 1>, scalar_prefetch = 0 : i64, scratch_operands = 0 : i64, tpu.core_type = #tpu.core_type<tc>, window_params = [{transform_indices = @transform_0, window_bounds = array<i64: 64, 128>}, {transform_indices = @transform_1, window_bounds = array<i64: 128, 512>}, {transform_indices = @transform_2, window_bounds = array<i64: 1, 512>}, {transform_indices = @transform_3, window_bounds = array<i64: 64, 512>}]} {
    %c0 = arith.constant 0 : index
    %c0_0 = arith.constant 0 : index
    %0 = vector.load %arg2[%c0, %c0_0] : memref<64x128xf32, #tpu.memory_space<vmem>>, vector<64x128xf32>
    %c0_1 = arith.constant 0 : index
    %c0_2 = arith.constant 0 : index
    %1 = vector.load %arg3[%c0_1, %c0_2] : memref<128x512xf32, #tpu.memory_space<vmem>>, vector<128x512xf32>
    %cst = arith.constant dense<0.000000e+00> : vector<64x512xf32>
    %2 = tpu.matmul %0, %1, %cst {dimension_numbers = #tpu.dot_dimension_numbers<[1], [0], [0], [1], [0, 0, 1, 1], [], []>} : vector<64x128xf32>, vector<128x512xf32>, vector<64x512xf32> -> vector<64x512xf32>
    %c0_3 = arith.constant 0 : index
    %c0_4 = arith.constant 0 : index
    %3 = vector.load %arg4[%c0_3, %c0_4] : memref<1x512xf32, #tpu.memory_space<vmem>>, vector<1x512xf32>
    %4 = vector.broadcast %3 : vector<1x512xf32> to vector<64x512xf32>
    %5 = arith.addf %2, %4 : vector<64x512xf32>
    %c0_5 = arith.constant 0 : index
    %c0_6 = arith.constant 0 : index
    %6 = vector.load %arg5[%c0_5, %c0_6] : memref<64x512xf32, #tpu.memory_space<vmem>>, vector<64x512xf32>
    tpu.vector_store %arg5[%c0_5, %c0_6], %5 {strides = array<i32>} : memref<64x512xf32, #tpu.memory_space<vmem>>, vector<64x512xf32>,
    return
  }
  func.func @transform_0(%arg0: i32, %arg1: i32) -> (i32, i32) {
    %c0_i32 = arith.constant 0 : i32
    %c0_i32_0 = arith.constant 0 : i32
    return %arg1, %c0_i32 : i32, i32
  }
  func.func @transform_1(%arg0: i32, %arg1: i32) -> (i32, i32) {
    %c0_i32 = arith.constant 0 : i32
    %c0_i32_0 = arith.constant 0 : i32
    return %c0_i32, %arg0 : i32, i32
  }
  func.func @transform_2(%arg0: i32, %arg1: i32) -> (i32, i32) {
    %c0_i32 = arith.constant 0 : i32
    %c0_i32_0 = arith.constant 0 : i32
    return %c0_i32, %arg0 : i32, i32
  }
  func.func @transform_3(%arg0: i32, %arg1: i32) -> (i32, i32) {
    %c0_i32 = arith.constant 0 : i32
    return %arg1, %arg0 : i32, i32
  }
}

</mosaic_0001>

<llo_original>
// kernel: tpu_custom_call.1
$region0: #{tpu_custom_call.1}
  #allocation0 [shape = 'u32[]', space=smem, size = 0x4, offset = 0x4, fixed_abs, tag = 'smem constant byte address 0x4 - core index']
  #allocation1 [shape = 'u32[144,128]{1,0:T(1,128)}', space=vmem, size = 0x12000, scoped, tag = 'internal scratch']
  %s0 = inlined_call_operand.hbm [shape: f32[64,128], index: 0, kind: input, shape index: {}]
  %s1 = inlined_call_operand.hbm [shape: f32[128,512], index: 1, kind: input, shape index: {}]
  %s2 = inlined_call_operand.vmem [shape: f32[1,512], index: 2, kind: input, shape index: {}]
  %s3 = inlined_call_operand.hbm [shape: f32[64,512], index: 3, kind: output, shape index: {}]
  %s4 = sld [smem:[#allocation0]]
  $region30: #{tpu_custom_call.1} parent=0
    _
  %s6 = ssub.s32 1, %s4
  %s7 = scalar_select 0, %s6, %s4
  $region1: #{tpu_custom_call.1} parent=0
    #allocation2 [shape = 'u8[32768]{0}', space=vmem, size = 0x8000, scoped, tag = 'input window, operand 0, single buffered']
    #allocation3 [shape = 's32[1]{0}', space=sflag, size = 0x4, scoped, tag = 'scoped memory for tpu_custom_call.1']
    #allocation4 [shape = 's32[1]{0}', space=sflag, size = 0x4, scoped, tag = 'scoped memory for tpu_custom_call.1']
    #allocation5 [shape = 'u8[262144]{0}', space=vmem, size = 0x40000, scoped, tag = 'input window, operand 1, single buffered']
    #allocation6 [shape = 's32[1]{0}', space=sflag, size = 0x4, scoped, tag = 'scoped memory for tpu_custom_call.1']
    #allocation7 [shape = 'u8[131072]{0}', space=vmem, size = 0x20000, scoped, tag = 'output window, operand 0, single buffered']
    %8 = vsyncpa [#allocation3], 0
    %9 = vsyncpa [#allocation6], 0
    %10 = vsyncpa [#allocation4], 0
    // Predicated region
    $region2: #{tpu_custom_call.1} parent=1 // pred_check
      _
    $region3: #{tpu_custom_call.1} parent=1 // pred_check_branch
      %12 = sbr.rel (0) target = $region5
    $region4: #{tpu_custom_call.1} parent=1 // pred_region
      %s14 = ssub.s32 1024, 1024
      %15 = vsyncadd [#allocation3], %s14
      %s16 = sshll.u32 [#allocation2], 4
      %s17 = int_to_ptr.vmem [resolvable:$true] %s16
      %22 = dma.hbm_to_vmem [thread:$0]  %s0, 1024, %s17, [#allocation3], 128, 128, 8
    $region5: #{tpu_custom_call.1} parent=1 // pred_fallthru
      _
    // Predicated region
    $region6: #{tpu_custom_call.1} parent=1 // pred_check
      _
    $region7: #{tpu_custom_call.1} parent=1 // pred_check_branch
      %24 = sbr.rel (0) target = $region9
    $region8: #{tpu_custom_call.1} parent=1 // pred_region
      %s26 = ssub.s32 8192, 8192
      %27 = vsyncadd [#allocation6], %s26
      %s28 = sshll.u32 [#allocation5], 4
      %s29 = int_to_ptr.vmem [resolvable:$true] %s28
      %34 = dma.hbm_to_vmem [thread:$0]  %s1, 8192, %s29, [#allocation6], 512, 512, 32
    $region9: #{tpu_custom_call.1} parent=1 // pred_fallthru
      _
    // Predicated region
    $region10: #{tpu_custom_call.1} parent=1 // pred_check
      _
    $region11: #{tpu_custom_call.1} parent=1 // pred_check_branch
      %36 = sbr.rel (0) target = $region13
    $region12: #{tpu_custom_call.1} parent=1 // pred_region
      _
    $region13: #{tpu_custom_call.1} parent=1 // pred_fallthru
      _
    // Predicated region
    $region14: #{tpu_custom_call.1} parent=1 // pred_check
      _
    $region15: #{tpu_custom_call.1} parent=1 // pred_check_branch
      %38 = sbr.rel (0) target = $region17
    $region16: #{tpu_custom_call.1} parent=1 // pred_region
      %39 = dma.done [#allocation3], 1024
    $region17: #{tpu_custom_call.1} parent=1 // pred_fallthru
      _
    // Predicated region
    $region18: #{tpu_custom_call.1} parent=1 // pred_check
      _
    $region19: #{tpu_custom_call.1} parent=1 // pred_check_branch
      %41 = sbr.rel (0) target = $region21
    $region20: #{tpu_custom_call.1} parent=1 // pred_region
      %42 = dma.done [#allocation6], 8192
    $region21: #{tpu_custom_call.1} parent=1 // pred_fallthru
      _
    %v43 = vld [vmem:[#allocation2] sm:$0xff]
    %v44 = vld [vmem:[#allocation2 + $0x8] sm:$0xff]
    %v45 = vld [vmem:[#allocation2 + $0x10] sm:$0xff]
    %v46 = vld [vmem:[#allocation2 + $0x18] sm:$0xff]
    %v47 = vld [vmem:[#allocation2 + $0x20] sm:$0xff]
    %v48 = vld [vmem:[#allocation2 + $0x28] sm:$0xff]
    %v49 = vld [vmem:[#allocation2 + $0x30] sm:$0xff]
    %v50 = vld [vmem:[#allocation2 + $0x38] sm:$0xff]
    %v51 = vld [vmem:[#allocation5] sm:$0xff]
    %v52 = vld [vmem:[#allocation5 + $0x8] sm:$0xff]
    %v53 = vld [vmem:[#allocation5 + $0x10] sm:$0xff]
    %v54 = vld [vmem:[#allocation5 + $0x18] sm:$0xff]
    %v55 = vld [vmem:[#allocation5 + $0x20] sm:$0xff]
    %v56 = vld [vmem:[#allocation5 + $0x28] sm:$0xff]
    %v57 = vld [vmem:[#allocation5 + $0x30] sm:$0xff]
    %v58 = vld [vmem:[#allocation5 + $0x38] sm:$0xff]
    %v59 = vld [vmem:[#allocation5 + $0x40] sm:$0xff]
    %v60 = vld [vmem:[#allocation5 + $0x48] sm:$0xff]
    %v61 = vld [vmem:[#allocation5 + $0x50] sm:$0xff]
    %v62 = vld [vmem:[#allocation5 + $0x58] sm:$0xff]
    %v63 = vld [vmem:[#allocation5 + $0x60] sm:$0xff]
    %v64 = vld [vmem:[#allocation5 + $0x68] sm:$0xff]
    %v65 = vld [vmem:[#allocation5 + $0x70] sm:$0xff]
    %v66 = vld [vmem:[#allocation5 + $0x78] sm:$0xff]
    %v67 = vld [vmem:[#allocation5 + $0x80] sm:$0xff]
    %v68 = vld [vmem:[#allocation5 + $0x88] sm:$0xff]
    %v69 = vld [vmem:[#allocation5 + $0x90] sm:$0xff]
    %v70 = vld [vmem:[#allocation5 + $0x98] sm:$0xff]
    %v71 = vld [vmem:[#allocation5 + $0xa0] sm:$0xff]
    %v72 = vld [vmem:[#allocation5 + $0xa8] sm:$0xff]
    %v73 = vld [vmem:[#allocation5 + $0xb0] sm:$0xff]
    %v74 = vld [vmem:[#allocation5 + $0xb8] sm:$0xff]
    %v75 = vld [vmem:[#allocation5 + $0xc0] sm:$0xff]
    %v76 = vld [vmem:[#allocation5 + $0xc8] sm:$0xff]
    %v77 = vld [vmem:[#allocation5 + $0xd0] sm:$0xff]
    %v78 = vld [vmem:[#allocation5 + $0xd8] sm:$0xff]
    %v79 = vld [vmem:[#allocation5 + $0xe0] sm:$0xff]
    %v80 = vld [vmem:[#allocation5 + $0xe8] sm:$0xff]
    %v81 = vld [vmem:[#allocation5 + $0xf0] sm:$0xff]
    %v82 = vld [vmem:[#allocation5 + $0xf8] sm:$0xff]
    %v83 = vld [vmem:[#allocation5 + $0x100] sm:$0xff]
    %v84 = vld [vmem:[#allocation5 + $0x108] sm:$0xff]
    %v85 = vld [vmem:[#allocation5 + $0x110] sm:$0xff]
    %v86 = vld [vmem:[#allocation5 + $0x118] sm:$0xff]
    %v87 = vld [vmem:[#allocation5 + $0x120] sm:$0xff]
    %v88 = vld [vmem:[#allocation5 + $0x128] sm:$0xff]
    %v89 = vld [vmem:[#allocation5 + $0x130] sm:$0xff]
    %v90 = vld [vmem:[#allocation5 + $0x138] sm:$0xff]
    %v91 = vld [vmem:[#allocation5 + $0x140] sm:$0xff]
    %v92 = vld [vmem:[#allocation5 + $0x148] sm:$0xff]
    %v93 = vld [vmem:[#allocation5 + $0x150] sm:$0xff]
    %v94 = vld [vmem:[#allocation5 + $0x158] sm:$0xff]
    %v95 = vld [vmem:[#allocation5 + $0x160] sm:$0xff]
    %v96 = vld [vmem:[#allocation5 + $0x168] sm:$0xff]
    %v97 = vld [vmem:[#allocation5 + $0x170] sm:$0xff]
    %v98 = vld [vmem:[#allocation5 + $0x178] sm:$0xff]
    %v99 = vld [vmem:[#allocation5 + $0x180] sm:$0xff]
    %v100 = vld [vmem:[#allocation5 + $0x188] sm:$0xff]
    %v101 = vld [vmem:[#allocation5 + $0x190] sm:$0xff]
    %v102 = vld [vmem:[#allocation5 + $0x198] sm:$0xff]
    %v103 = vld [vmem:[#allocation5 + $0x1a0] sm:$0xff]
    %v104 = vld [vmem:[#allocation5 + $0x1a8] sm:$0xff]
    %v105 = vld [vmem:[#allocation5 + $0x1b0] sm:$0xff]
    %v106 = vld [vmem:[#allocation5 + $0x1b8] sm:$0xff]
    %v107 = vld [vmem:[#allocation5 + $0x1c0] sm:$0xff]
    %v108 = vld [vmem:[#allocation5 + $0x1c8] sm:$0xff]
    %v109 = vld [vmem:[#allocation5 + $0x1d0] sm:$0xff]
    %v110 = vld [vmem:[#allocation5 + $0x1d8] sm:$0xff]
    %v111 = vld [vmem:[#allocation5 + $0x1e0] sm:$0xff]
    %v112 = vld [vmem:[#allocation5 + $0x1e8] sm:$0xff]
    %v113 = vld [vmem:[#allocation5 + $0x1f0] sm:$0xff]
    %v114 = vld [vmem:[#allocation5 + $0x1f8] sm:$0xff]
    %v115 = vld [vmem:[%s2] sm:$0xf]
    %v117 = vlaneseq
    %v118 = vshrl.u32 %v117, 7
    %v119 = vsub.s32 0, %v118
    %v120 = vrot.slane %v115, %v119
    %v121 = vlaneseq
    %v122 = vshrl.u32 %v121, 7
    %v123 = vsub.s32 1, %v122
    %v124 = vrot.slane %v115, %v123
    %v125 = vlaneseq
    %v126 = vshrl.u32 %v125, 7
    %v127 = vsub.s32 2, %v126
    %v128 = vrot.slane %v115, %v127
    %v129 = vlaneseq
    %v130 = vshrl.u32 %v129, 7
    %v131 = vsub.s32 3, %v130
    %v132 = vrot.slane %v115, %v131
    %137 = vmatprep.subr.mxu0 %v52
    %138 = vmatpush1.msra.mxu0 %v51
    %139 = vmatprep.subr.mxu0 %v56
    %140 = vmatpush1.msra.mxu0 %v55
    %141 = vmatprep.subr.mxu0 %v60
    %142 = vmatpush1.msra.mxu0 %v59
    %143 = vmatprep.subr.mxu0 %v64
    %144 = vmatpush1.msra.mxu0 %v63
    %145 = vmatprep.subr.mxu0 %v68
    %146 = vmatpush1.msra.mxu0 %v67
    %147 = vmatprep.subr.mxu0 %v72
    %148 = vmatpush1.msra.mxu0 %v71
    %149 = vmatprep.subr.mxu0 %v76
    %150 = vmatpush1.msra.mxu0 %v75
    %151 = vmatprep.subr.mxu0 %v80
    %152 = vmatpush1.msra.mxu0 %v79
    %153 = vmatprep.subr.mxu0 %v84
    %154 = vmatpush1.msra.mxu0 %v83
    %155 = vmatprep.subr.mxu0 %v88
    %156 = vmatpush1.msra.mxu0 %v87
    %157 = vmatprep.subr.mxu0 %v92
    %158 = vmatpush1.msra.mxu0 %v91
    %159 = vmatprep.subr.mxu0 %v96
    %160 = vmatpush1.msra.mxu0 %v95
    %161 = vmatprep.subr.mxu0 %v100
    %162 = vmatpush1.msra.mxu0 %v99
    %163 = vmatprep.subr.mxu0 %v104
    %164 = vmatpush1.msra.mxu0 %v103
    %165 = vmatprep.subr.mxu0 %v108
    %166 = vmatpush1.msra.mxu0 %v107
    %167 = vmatprep.subr.mxu0 %v112
    %168 = vmatpush1.msra.mxu0 %v111
    %169 = vmatprep.subr.mxu0 0.0
    %170 = vmatpush1.msra.mxu0 0.0
    %171 = vmatprep.subr.mxu0 0.0
    %172 = vmatpush1.msra.mxu0 0.0
    %173 = vmatprep.subr.mxu0 0.0
    %174 = vmatpush1.msra.mxu0 0.0
    %175 = vmatprep.subr.mxu0 0.0
    %176 = vmatpush1.msra.mxu0 0.0
    %177 = vmatprep.subr.mxu0 0.0
    %178 = vmatpush1.msra.mxu0 0.0
    %179 = vmatprep.subr.mxu0 0.0
    %180 = vmatpush1.msra.mxu0 0.0
    %181 = vmatprep.subr.mxu0 0.0
    %182 = vmatpush1.msra.mxu0 0.0
    %183 = vmatprep.subr.mxu0 0.0
    %184 = vmatpush1.msra.mxu0 0.0
    %185 = vmatprep.subr.mxu0 0.0
    %186 = vmatpush1.msra.mxu0 0.0
    %187 = vmatprep.subr.mxu0 0.0
    %188 = vmatpush1.msra.mxu0 0.0
    %189 = vmatprep.subr.mxu0 0.0
    %190 = vmatpush1.msra.mxu0 0.0
    %191 = vmatprep.subr.mxu0 0.0
    %192 = vmatpush1.msra.mxu0 0.0
    %193 = vmatprep.subr.mxu0 0.0
    %194 = vmatpush1.msra.mxu0 0.0
    %195 = vmatprep.subr.mxu0 0.0
    %196 = vmatpush1.msra.mxu0 0.0
    %197 = vmatprep.subr.mxu0 0.0
    %198 = vmatpush1.msra.mxu0 0.0
    %199 = vmatprep.subr.mxu0 0.0
    %200 = vmatpush1.msra.mxu0 0.0
    %201 = vmatprep.mubr.f32.mxu0 0.0
    %202 = vmatmul.mubr.f32.gmra.mrb[0].mxu0 %v43
    %v203 = vpop.f32.mrb[0].mxu0
    %v204 = vadd.f32 %v120, %v203
    %v205 = vpop.f32.mrb[0].mxu0
    %v206 = vadd.f32 %v124, %v205
    %207 = vmatprep.mubr.f32.mxu0 0.0
    %208 = vmatmul.mubr.f32.gmra.mrb[0].mxu0 %v44
    %v209 = vpop.f32.mrb[0].mxu0
    %v210 = vadd.f32 %v120, %v209
    %v211 = vpop.f32.mrb[0].mxu0
    %v212 = vadd.f32 %v124, %v211
    %213 = vmatprep.mubr.f32.mxu0 0.0
    %214 = vmatmul.mubr.f32.gmra.mrb[0].mxu0 %v45
    %v215 = vpop.f32.mrb[0].mxu0
    %v216 = vadd.f32 %v120, %v215
    %v217 = vpop.f32.mrb[0].mxu0
    %v218 = vadd.f32 %v124, %v217
    %219 = vmatprep.mubr.f32.mxu0 0.0
    %220 = vmatmul.mubr.f32.gmra.mrb[0].mxu0 %v46
    %v221 = vpop.f32.mrb[0].mxu0
    %v222 = vadd.f32 %v120, %v221
    %v223 = vpop.f32.mrb[0].mxu0
    %v224 = vadd.f32 %v124, %v223
    %225 = vmatprep.mubr.f32.mxu0 0.0
    %226 = vmatmul.mubr.f32.gmra.mrb[0].mxu0 %v47
    %v227 = vpop.f32.mrb[0].mxu0
    %v228 = vadd.f32 %v120, %v227
    %v229 = vpop.f32.mrb[0].mxu0
    %v230 = vadd.f32 %v124, %v229
    %231 = vmatprep.mubr.f32.mxu0 0.0
    %232 = vmatmul.mubr.f32.gmra.mrb[0].mxu0 %v48
    %v233 = vpop.f32.mrb[0].mxu0
    %v234 = vadd.f32 %v120, %v233
    %v235 = vpop.f32.mrb[0].mxu0
    %v236 = vadd.f32 %v124, %v235
    %237 = vmatprep.mubr.f32.mxu0 0.0
    %238 = vmatmul.mubr.f32.gmra.mrb[0].mxu0 %v49
    %v239 = vpop.f32.mrb[0].mxu0
    %v240 = vadd.f32 %v120, %v239
    %v241 = vpop.f32.mrb[0].mxu0
    %v242 = vadd.f32 %v124, %v241
    %243 = vmatprep.mubr.f32.mxu0 0.0
    %244 = vmatmul.mubr.f32.gmra.mrb[0].mxu0 %v50
    %v245 = vpop.f32.mrb[0].mxu0
    %v246 = vadd.f32 %v120, %v245
    %v247 = vpop.f32.mrb[0].mxu0
    %v248 = vadd.f32 %v124, %v247
    %249 = vdwg.mxu0
    %250 = vmatprep.subr.mxu0 %v54
    %251 = vmatpush1.msra.mxu0 %v53
    %252 = vmatprep.subr.mxu0 %v58
    %253 = vmatpush1.msra.mxu0 %v57
    %254 = vmatprep.subr.mxu0 %v62
    %255 = vmatpush1.msra.mxu0 %v61
    %256 = vmatprep.subr.mxu0 %v66
    %257 = vmatpush1.msra.mxu0 %v65
    %258 = vmatprep.subr.mxu0 %v70
    %259 = vmatpush1.msra.mxu0 %v69
    %260 = vmatprep.subr.mxu0 %v74
    %261 = vmatpush1.msra.mxu0 %v73
    %262 = vmatprep.subr.mxu0 %v78
    %263 = vmatpush1.msra.mxu0 %v77
    %264 = vmatprep.subr.mxu0 %v82
    %265 = vmatpush1.msra.mxu0 %v81
    %266 = vmatprep.subr.mxu0 %v86
    %267 = vmatpush1.msra.mxu0 %v85
    %268 = vmatprep.subr.mxu0 %v90
    %269 = vmatpush1.msra.mxu0 %v89
    %270 = vmatprep.subr.mxu0 %v94
    %271 = vmatpush1.msra.mxu0 %v93
    %272 = vmatprep.subr.mxu0 %v98
    %273 = vmatpush1.msra.mxu0 %v97
    %274 = vmatprep.subr.mxu0 %v102
    %275 = vmatpush1.msra.mxu0 %v101
    %276 = vmatprep.subr.mxu0 %v106
    %277 = vmatpush1.msra.mxu0 %v105
    %278 = vmatprep.subr.mxu0 %v110
    %279 = vmatpush1.msra.mxu0 %v109
    %280 = vmatprep.subr.mxu0 %v114
    %281 = vmatpush1.msra.mxu0 %v113
    %282 = vmatprep.subr.mxu0 0.0
    %283 = vmatpush1.msra.mxu0 0.0
    %284 = vmatprep.subr.mxu0 0.0
    %285 = vmatpush1.msra.mxu0 0.0
    %286 = vmatprep.subr.mxu0 0.0
    %287 = vmatpush1.msra.mxu0 0.0
    %288 = vmatprep.subr.mxu0 0.0
    %289 = vmatpush1.msra.mxu0 0.0
    %290 = vmatprep.subr.mxu0 0.0
    %291 = vmatpush1.msra.mxu0 0.0
    %292 = vmatprep.subr.mxu0 0.0
    %293 = vmatpush1.msra.mxu0 0.0
    %294 = vmatprep.subr.mxu0 0.0
    %295 = vmatpush1.msra.mxu0 0.0
    %296 = vmatprep.subr.mxu0 0.0
    %297 = vmatpush1.msra.mxu0 0.0
    %298 = vmatprep.subr.mxu0 0.0
    %299 = vmatpush1.msra.mxu0 0.0
    %300 = vmatprep.subr.mxu0 0.0
    %301 = vmatpush1.msra.mxu0 0.0
    %302 = vmatprep.subr.mxu0 0.0
    %303 = vmatpush1.msra.mxu0 0.0
    %304 = vmatprep.subr.mxu0 0.0
    %305 = vmatpush1.msra.mxu0 0.0
    %306 = vmatprep.subr.mxu0 0.0
    %307 = vmatpush1.msra.mxu0 0.0
    %308 = vmatprep.subr.mxu0 0.0
    %309 = vmatpush1.msra.mxu0 0.0
    %310 = vmatprep.subr.mxu0 0.0
    %311 = vmatpush1.msra.mxu0 0.0
    %312 = vmatprep.subr.mxu0 0.0
    %313 = vmatpush1.msra.mxu0 0.0
    %314 = vmatprep.mubr.f32.mxu0 0.0
    %315 = vmatmul.mubr.f32.gmra.mrb[0].mxu0 %v43
    %v316 = vpop.f32.mrb[0].mxu0
    %v317 = vadd.f32 %v128, %v316
    %v318 = vpop.f32.mrb[0].mxu0
    %v319 = vadd.f32 %v132, %v318
    %320 = vmatprep.mubr.f32.mxu0 0.0
    %321 = vmatmul.mubr.f32.gmra.mrb[0].mxu0 %v44
    %v322 = vpop.f32.mrb[0].mxu0
    %v323 = vadd.f32 %v128, %v322
    %v324 = vpop.f32.mrb[0].mxu0
    %v325 = vadd.f32 %v132, %v324
    %326 = vmatprep.mubr.f32.mxu0 0.0
    %327 = vmatmul.mubr.f32.gmra.mrb[0].mxu0 %v45
    %v328 = vpop.f32.mrb[0].mxu0
    %v329 = vadd.f32 %v128, %v328
    %v330 = vpop.f32.mrb[0].mxu0
    %v331 = vadd.f32 %v132, %v330
    %332 = vmatprep.mubr.f32.mxu0 0.0
    %333 = vmatmul.mubr.f32.gmra.mrb[0].mxu0 %v46
    %v334 = vpop.f32.mrb[0].mxu0
    %v335 = vadd.f32 %v128, %v334
    %v336 = vpop.f32.mrb[0].mxu0
    %v337 = vadd.f32 %v132, %v336
    %338 = vmatprep.mubr.f32.mxu0 0.0
    %339 = vmatmul.mubr.f32.gmra.mrb[0].mxu0 %v47
    %v340 = vpop.f32.mrb[0].mxu0
    %v341 = vadd.f32 %v128, %v340
    %v342 = vpop.f32.mrb[0].mxu0
    %v343 = vadd.f32 %v132, %v342
    %344 = vmatprep.mubr.f32.mxu0 0.0
    %345 = vmatmul.mubr.f32.gmra.mrb[0].mxu0 %v48
    %v346 = vpop.f32.mrb[0].mxu0
    %v347 = vadd.f32 %v128, %v346
    %v348 = vpop.f32.mrb[0].mxu0
    %v349 = vadd.f32 %v132, %v348
    %350 = vmatprep.mubr.f32.mxu0 0.0
    %351 = vmatmul.mubr.f32.gmra.mrb[0].mxu0 %v49
    %v352 = vpop.f32.mrb[0].mxu0
    %v353 = vadd.f32 %v128, %v352
    %v354 = vpop.f32.mrb[0].mxu0
    %v355 = vadd.f32 %v132, %v354
    %356 = vmatprep.mubr.f32.mxu0 0.0
    %357 = vmatmul.mubr.f32.gmra.mrb[0].mxu0 %v50
    %v358 = vpop.f32.mrb[0].mxu0
    %v359 = vadd.f32 %v128, %v358
    %v360 = vpop.f32.mrb[0].mxu0
    %v361 = vadd.f32 %v132, %v360
    %362 = vdwg.mxu0
    %363 = vst [vmem:[#allocation7] sm:$0xff] %v204
    %364 = vst [vmem:[#allocation7 + $0x8] sm:$0xff] %v206
    %365 = vst [vmem:[#allocation7 + $0x10] sm:$0xff] %v317
    %366 = vst [vmem:[#allocation7 + $0x18] sm:$0xff] %v319
    %367 = vst [vmem:[#allocation7 + $0x20] sm:$0xff] %v210
    %368 = vst [vmem:[#allocation7 + $0x28] sm:$0xff] %v212
    %369 = vst [vmem:[#allocation7 + $0x30] sm:$0xff] %v323
    %370 = vst [vmem:[#allocation7 + $0x38] sm:$0xff] %v325
    %371 = vst [vmem:[#allocation7 + $0x40] sm:$0xff] %v216
    %372 = vst [vmem:[#allocation7 + $0x48] sm:$0xff] %v218
    %373 = vst [vmem:[#allocation7 + $0x50] sm:$0xff] %v329
    %374 = vst [vmem:[#allocation7 + $0x58] sm:$0xff] %v331
    %375 = vst [vmem:[#allocation7 + $0x60] sm:$0xff] %v222
    %376 = vst [vmem:[#allocation7 + $0x68] sm:$0xff] %v224
    %377 = vst [vmem:[#allocation7 + $0x70] sm:$0xff] %v335
    %378 = vst [vmem:[#allocation7 + $0x78] sm:$0xff] %v337
    %379 = vst [vmem:[#allocation7 + $0x80] sm:$0xff] %v228
    %380 = vst [vmem:[#allocation7 + $0x88] sm:$0xff] %v230
    %381 = vst [vmem:[#allocation7 + $0x90] sm:$0xff] %v341
    %382 = vst [vmem:[#allocation7 + $0x98] sm:$0xff] %v343
    %383 = vst [vmem:[#allocation7 + $0xa0] sm:$0xff] %v234
    %384 = vst [vmem:[#allocation7 + $0xa8] sm:$0xff] %v236
    %385 = vst [vmem:[#allocation7 + $0xb0] sm:$0xff] %v347
    %386 = vst [vmem:[#allocation7 + $0xb8] sm:$0xff] %v349
    %387 = vst [vmem:[#allocation7 + $0xc0] sm:$0xff] %v240
    %388 = vst [vmem:[#allocation7 + $0xc8] sm:$0xff] %v242
    %389 = vst [vmem:[#allocation7 + $0xd0] sm:$0xff] %v353
    %390 = vst [vmem:[#allocation7 + $0xd8] sm:$0xff] %v355
    %391 = vst [vmem:[#allocation7 + $0xe0] sm:$0xff] %v246
    %392 = vst [vmem:[#allocation7 + $0xe8] sm:$0xff] %v248
    %393 = vst [vmem:[#allocation7 + $0xf0] sm:$0xff] %v359
    %394 = vst [vmem:[#allocation7 + $0xf8] sm:$0xff] %v361
    // Predicated region
    $region22: #{tpu_custom_call.1} parent=1 // pred_check
      _
    $region23: #{tpu_custom_call.1} parent=1 // pred_check_branch
      %396 = sbr.rel (0) target = $region25
    $region24: #{tpu_custom_call.1} parent=1 // pred_region
      %s398 = ssub.s32 4096, 4096
      %399 = vsyncadd [#allocation4], %s398
      %s400 = sshll.u32 [#allocation7], 4
      %s401 = int_to_ptr.vmem [resolvable:$true] %s400
      %406 = dma.vmem_to_hbm [thread:$0]  %s401, 4096, %s3, [#allocation4], 512, 512, 32
    $region25: #{tpu_custom_call.1} parent=1 // pred_fallthru
      _
    // Predicated region
    $region26: #{tpu_custom_call.1} parent=1 // pred_check
      _
    $region27: #{tpu_custom_call.1} parent=1 // pred_check_branch
      %408 = sbr.rel (0) target = $region29
    $region28: #{tpu_custom_call.1} parent=1 // pred_region
      %409 = dma.done [#allocation4], 4096
    $region29: #{tpu_custom_call.1} parent=1 // pred_fallthru
      _
    %410 = vsyncpa [#allocation3], 1
    %411 = vsyncpa [#allocation6], 1
    %412 = vsyncpa [#allocation4], 1

</llo_original>
